<compile_context>
chip_gen: v6e
topology: v6e:2x2x1
jax: 0.10.0
libtpu: 0.0.40
codegen_flags: <defaults>
</compile_context>

<pallas_src>
import jax
import jax.numpy as jnp
from jax import lax
from jax.experimental import pallas as pl
from jax.experimental.pallas import tpu as pltpu

EPS = 1e-5
SLOPE = 0.01   # nn.LeakyReLU default negative_slope
C1, C2 = 4, 8  # channel counts fixed by the module


def fecnn_kernel(x_ref,    # (1, B*L)        input, batch folded onto lanes
                 p1_ref,   # (C1, 5)         [w(-1), w(0), w(+1), gamma, beta]
                 p2_ref,   # (C2, 3*C1 + 2)  [w2m (k*C1+ci), gamma, beta]
                 w3_ref,   # (NC, C2*L)      linear weight, UNPADDED
                 b3_ref,   # (1, NC)         linear bias
                 o_ref):   # (B, NC)         output
    B = o_ref.shape[0]
    BL = x_ref.shape[1]
    L = BL // B
    inv_n = 1.0 / BL  # 1 / (B*L): BN averages over batch and length

    # Segment-boundary masks for the k=3 / pad=1 convs.  O(1) in batch:
    # lane position within each length-L segment.
    pos = lax.broadcasted_iota(jnp.int32, (1, BL), 1)
    if (L & (L - 1)) == 0:
        lpos = jnp.bitwise_and(pos, L - 1)     # L is a power of two
    else:
        lpos = lax.rem(pos, L)
    is_first = lpos == 0
    is_last = lpos == (L - 1)

    def shift_m1(a):  # value of a[l-1] at position l (zero at segment start)
        return jnp.where(is_first, 0.0, pltpu.roll(a, shift=1, axis=1))

    def shift_p1(a):  # value of a[l+1] at position l (zero at segment end)
        return jnp.where(is_last, 0.0, pltpu.roll(a, shift=BL - 1, axis=1))

    def bn_leaky(y, g_col, b_col):
        # One-pass training-mode BatchNorm (biased var) + LeakyReLU.
        mean = jnp.sum(y, axis=1, keepdims=True) * inv_n       # (C, 1)
        ex2 = jnp.sum(y * y, axis=1, keepdims=True) * inv_n    # (C, 1)
        var = jnp.maximum(ex2 - mean * mean, 0.0)               # clamp cancellation
        scale = g_col * lax.rsqrt(var + EPS)
        shift = b_col - mean * scale
        h = y * scale + shift
        return jnp.where(h >= 0, h, SLOPE * h)

    # ---- conv1 (1 -> 4) + BN1 + LeakyReLU (conv bias cancels under BN) ----
    xr = x_ref[...]                                   # (1, B*L)
    x_m1 = shift_m1(xr)
    x_p1 = shift_p1(xr)
    p1 = p1_ref[...]                                  # (C1, 5)
    y1 = p1[:, 0:1] * x_m1 + p1[:, 1:2] * xr + p1[:, 2:3] * x_p1   # (C1, B*L)
    h1 = bn_leaky(y1, p1[:, 3:4], p1[:, 4:5])

    # ---- conv2 (4 -> 8) as one MXU matmul + BN2 + LeakyReLU ---------------
    # stack rows r = k*C1 + ci: [h1[l-1] (k=0); h1[l] (k=1); h1[l+1] (k=2)]
    stack12 = jnp.concatenate([shift_m1(h1), h1, shift_p1(h1)], axis=0)  # (12, B*L)
    p2 = p2_ref[...]                                  # (C2, 14)
    y2 = jnp.dot(p2[:, 0:3 * C1], stack12,
                 preferred_element_type=jnp.float32)  # (C2, B*L)
    h2 = bn_leaky(y2, p2[:, 3 * C1:3 * C1 + 1], p2[:, 3 * C1 + 1:3 * C1 + 2])

    # ---- Flatten + Linear: one lane-dense MXU matmul ----------------------
    # Relayout (C2, B*L) -> (B, C2*L) so flatten order matches PyTorch
    # (index c*L + l).  L % 128 == 0 keeps every slice lane-group aligned.
    # (O(B*C2) traced slice+concat ops; fine at small B — switch to a single
    # einshape/reshape relayout if batch grows.)
    rows = []
    for b in range(B):
        rows.append(jnp.concatenate(
            [h2[c:c + 1, b * L:(b + 1) * L] for c in range(C2)], axis=1))
    h2flat = jnp.concatenate(rows, axis=0)            # (B, C2*L)

    # Contract against the UNPADDED (NC, C2*L) weight (trans-B matmul).
    out = lax.dot_general(h2flat, w3_ref[...],
                          dimension_numbers=(((1,), (1,)), ((), ())),
                          preferred_element_type=jnp.float32)   # (B, NC)
    o_ref[...] = out + b3_ref[...]


def prepare_params(params):
    """One-time (model-load) parameter relayout; keep out of the hot path."""
    w1, b1, g1, be1, w2, b2, g2, be2, w3, b3 = params
    del b1, b2  # conv biases are a no-op under training-mode BatchNorm
    p1 = jnp.concatenate([w1[:, 0, :], g1[:, None], be1[:, None]], axis=1)   # (4, 5)
    w2m = jnp.transpose(w2, (0, 2, 1)).reshape(C2, 3 * C1)                   # (8, 12)
    p2 = jnp.concatenate([w2m, g2[:, None], be2[:, None]], axis=1)           # (8, 14)
    w3r = w3                          # (NC, 8*L): unpadded, sublane-pad only
    b3r = b3.reshape(1, -1)           # (1, NC)
    return (p1, p2, w3r, b3r)


def fecnn_forward(x, prepared):
    """x: (B, 1, L) float32, prepared = prepare_params(...) -> (B, NC)."""
    p1, p2, w3, b3 = prepared
    B, _, L = x.shape
    NC = w3.shape[0]
    assert w3.shape[1] == C2 * L, "linear weight does not match in_features*8"
    assert L % 128 == 0, "layout assumes L is a multiple of 128 lanes"

    xr = x.reshape(1, B * L)   # trivial (contiguous) reshape

    vmem = pl.BlockSpec(memory_space=pltpu.MemorySpace.VMEM)
    return pl.pallas_call(
        fecnn_kernel,
        out_shape=jax.ShapeDtypeStruct((B, NC), jnp.float32),
        in_specs=[vmem, vmem, vmem, vmem, vmem],
        out_specs=vmem,
        compiler_params=pltpu.CompilerParams(
            vmem_limit_bytes=32 * 1024 * 1024),
    )(xr, p1, p2, w3, b3)


def fecnn_reference(x, params):
    """Pure-JAX reference matching the PyTorch forward (training-mode BN)."""
    w1, b1, g1, be1, w2, b2, g2, be2, w3, b3 = params

    def conv1d(inp, w, b):
        y = lax.conv_general_dilated(
            inp, w, window_strides=(1,), padding=[(1, 1)],
            dimension_numbers=('NCH', 'OIH', 'NCH'))
        return y + b[None, :, None]

    def bn_train(y, g, b):
        mu = jnp.mean(y, axis=(0, 2), keepdims=True)
        var = jnp.mean((y - mu) ** 2, axis=(0, 2), keepdims=True)
        return (y - mu) / jnp.sqrt(var + EPS) * g[None, :, None] + b[None, :, None]

    def leaky(z):
        return jnp.where(z >= 0, z, SLOPE * z)

    y = leaky(bn_train(conv1d(x, w1, b1), g1, be1))
    y = leaky(bn_train(conv1d(y, w2, b2), g2, be2))
    flat = y.reshape(y.shape[0], -1)
    return flat @ w3.T + b3


def make_params(key, in_features, num_classes):
    ks = jax.random.split(key, 8)
    w1 = 0.3 * jax.random.normal(ks[0], (4, 1, 3), jnp.float32)
    b1 = 0.1 * jax.random.normal(ks[1], (4,), jnp.float32)
    g1 = 1.0 + 0.1 * jax.random.normal(ks[2], (4,), jnp.float32)
    be1 = 0.1 * jax.random.normal(ks[3], (4,), jnp.float32)
    w2 = 0.3 * jax.random.normal(ks[4], (8, 4, 3), jnp.float32)
    b2 = 0.1 * jax.random.normal(ks[5], (8,), jnp.float32)
    g2 = 1.0 + 0.1 * jax.random.normal(ks[6], (8,), jnp.float32)
    be2 = 0.1 * jax.random.normal(ks[7], (8,), jnp.float32)
    k2 = jax.random.split(jax.random.fold_in(key, 99), 2)
    w3 = 0.05 * jax.random.normal(k2[0], (num_classes, in_features * 8), jnp.float32)
    b3 = 0.1 * jax.random.normal(k2[1], (num_classes,), jnp.float32)
    return (w1, b1, g1, be1, w2, b2, g2, be2, w3, b3)


if __name__ == "__main__":
    B, IN_FEATURES, NUM_CLASSES = 2, 128, 10

    key = jax.random.PRNGKey(0)
    kx, kp = jax.random.split(key)
    x = jax.random.normal(kx, (B, 1, IN_FEATURES), jnp.float32)
    params = make_params(kp, IN_FEATURES, NUM_CLASSES)

    # One-time parameter relayout (hoisted out of the per-call hot path).
    prepared = jax.block_until_ready(prepare_params(params))

    fwd = jax.jit(fecnn_forward)
    out = jax.block_until_ready(fwd(x, prepared))
    ref = jax.block_until_ready(fecnn_reference(x, params))

    assert out.shape == (B, NUM_CLASSES)
    assert jnp.allclose(out, ref, rtol=2e-3, atol=2e-3), (
        f"mismatch: max abs err {jnp.max(jnp.abs(out - ref))}")
    print("KERNEL_OK")
</pallas_src>

<mosaic_0001>
module attributes {stable_mosaic.version = 11 : i64} {
  func.func @fecnn_kernel(%arg0: memref<1x256xf32, #tpu.memory_space<vmem>>, %arg1: memref<4x5xf32, #tpu.memory_space<vmem>>, %arg2: memref<8x14xf32, #tpu.memory_space<vmem>>, %arg3: memref<10x1024xf32, #tpu.memory_space<vmem>>, %arg4: memref<1x10xf32, #tpu.memory_space<vmem>>, %arg5: memref<2x10xf32, #tpu.memory_space<vmem>>) attributes {dimension_semantics = [], scalar_prefetch = 0 : i64, scratch_operands = 0 : i64, tpu.core_type = #tpu.core_type<tc>} {
    %0 = tpu.iota {dimensions = array<i32: 1>} : vector<1x256xi32>
    %c127_i32 = arith.constant 127 : i32
    %1 = vector.broadcast %c127_i32 : i32 to vector<1x256xi32>
    %2 = arith.andi %0, %1 : vector<1x256xi32>
    %c0_i32 = arith.constant 0 : i32
    %3 = vector.broadcast %c0_i32 : i32 to vector<1x256xi32>
    %4 = arith.cmpi eq, %2, %3 : vector<1x256xi32>
    %c127_i32_0 = arith.constant 127 : i32
    %5 = vector.broadcast %c127_i32_0 : i32 to vector<1x256xi32>
    %6 = arith.cmpi eq, %2, %5 : vector<1x256xi32>
    %c0 = arith.constant 0 : index
    %c0_1 = arith.constant 0 : index
    %7 = vector.load %arg0[%c0, %c0_1] : memref<1x256xf32, #tpu.memory_space<vmem>>, vector<1x256xf32>
    %c1_i32 = arith.constant 1 : i32
    %8 = tpu.dynamic_rotate %7 by %c1_i32 dim 1 : vector<1x256xf32>, i32 -> vector<1x256xf32>
    %cst = arith.constant 0.000000e+00 : f32
    %9 = vector.broadcast %cst : f32 to vector<1x256xf32>
    %10 = arith.select %4, %9, %8 : vector<1x256xi1>, vector<1x256xf32>
    %c255_i32 = arith.constant 255 : i32
    %11 = tpu.dynamic_rotate %7 by %c255_i32 dim 1 : vector<1x256xf32>, i32 -> vector<1x256xf32>
    %cst_2 = arith.constant 0.000000e+00 : f32
    %12 = vector.broadcast %cst_2 : f32 to vector<1x256xf32>
    %13 = arith.select %6, %12, %11 : vector<1x256xi1>, vector<1x256xf32>
    %c0_3 = arith.constant 0 : index
    %c0_4 = arith.constant 0 : index
    %14 = vector.load %arg1[%c0_3, %c0_4] : memref<4x5xf32, #tpu.memory_space<vmem>>, vector<4x5xf32>
    %15 = vector.extract_strided_slice %14 {offsets = [0, 0], sizes = [4, 1], strides = [1, 1]} : vector<4x5xf32> to vector<4x1xf32>
    %16 = vector.broadcast %15 : vector<4x1xf32> to vector<4x256xf32>
    %17 = vector.broadcast %10 : vector<1x256xf32> to vector<4x256xf32>
    %18 = arith.mulf %16, %17 : vector<4x256xf32>
    %19 = vector.extract_strided_slice %14 {offsets = [0, 1], sizes = [4, 1], strides = [1, 1]} : vector<4x5xf32> to vector<4x1xf32>
    %20 = vector.broadcast %19 : vector<4x1xf32> to vector<4x256xf32>
    %21 = vector.broadcast %7 : vector<1x256xf32> to vector<4x256xf32>
    %22 = arith.mulf %20, %21 : vector<4x256xf32>
    %23 = arith.addf %18, %22 : vector<4x256xf32>
    %24 = vector.extract_strided_slice %14 {offsets = [0, 2], sizes = [4, 1], strides = [1, 1]} : vector<4x5xf32> to vector<4x1xf32>
    %25 = vector.broadcast %24 : vector<4x1xf32> to vector<4x256xf32>
    %26 = vector.broadcast %13 : vector<1x256xf32> to vector<4x256xf32>
    %27 = arith.mulf %25, %26 : vector<4x256xf32>
    %28 = arith.addf %23, %27 : vector<4x256xf32>
    %29 = vector.extract_strided_slice %14 {offsets = [0, 3], sizes = [4, 1], strides = [1, 1]} : vector<4x5xf32> to vector<4x1xf32>
    %30 = vector.extract_strided_slice %14 {offsets = [0, 4], sizes = [4, 1], strides = [1, 1]} : vector<4x5xf32> to vector<4x1xf32>
    %cst_5 = arith.constant dense<0.000000e+00> : vector<4xf32>
    %31 = vector.multi_reduction <add>, %28, %cst_5 [1] : vector<4x256xf32> to vector<4xf32>
    %32 = vector.shape_cast %31 : vector<4xf32> to vector<4x1xf32>
    %cst_6 = arith.constant 3.906250e-03 : f32
    %33 = vector.broadcast %cst_6 : f32 to vector<4x1xf32>
    %34 = arith.mulf %32, %33 : vector<4x1xf32>
    %35 = arith.mulf %28, %28 : vector<4x256xf32>
    %cst_7 = arith.constant dense<0.000000e+00> : vector<4xf32>
    %36 = vector.multi_reduction <add>, %35, %cst_7 [1] : vector<4x256xf32> to vector<4xf32>
    %37 = vector.shape_cast %36 : vector<4xf32> to vector<4x1xf32>
    %cst_8 = arith.constant 3.906250e-03 : f32
    %38 = vector.broadcast %cst_8 : f32 to vector<4x1xf32>
    %39 = arith.mulf %37, %38 : vector<4x1xf32>
    %40 = arith.mulf %34, %34 : vector<4x1xf32>
    %41 = arith.subf %39, %40 : vector<4x1xf32>
    %cst_9 = arith.constant 0.000000e+00 : f32
    %42 = vector.broadcast %cst_9 : f32 to vector<4x1xf32>
    %43 = arith.maximumf %41, %42 : vector<4x1xf32>
    %cst_10 = arith.constant 9.99999974E-6 : f32
    %44 = vector.broadcast %cst_10 : f32 to vector<4x1xf32>
    %45 = arith.addf %43, %44 : vector<4x1xf32>
    %46 = math.rsqrt %45 : vector<4x1xf32>
    %47 = arith.mulf %29, %46 : vector<4x1xf32>
    %48 = arith.mulf %34, %47 : vector<4x1xf32>
    %49 = arith.subf %30, %48 : vector<4x1xf32>
    %50 = vector.broadcast %47 : vector<4x1xf32> to vector<4x256xf32>
    %51 = arith.mulf %28, %50 : vector<4x256xf32>
    %52 = vector.broadcast %49 : vector<4x1xf32> to vector<4x256xf32>
    %53 = arith.addf %51, %52 : vector<4x256xf32>
    %cst_11 = arith.constant 0.000000e+00 : f32
    %54 = vector.broadcast %cst_11 : f32 to vector<4x256xf32>
    %55 = arith.cmpf oge, %53, %54 : vector<4x256xf32>
    %cst_12 = arith.constant 0.00999999977 : f32
    %56 = vector.broadcast %cst_12 : f32 to vector<4x256xf32>
    %57 = arith.mulf %56, %53 : vector<4x256xf32>
    %58 = arith.select %55, %53, %57 : vector<4x256xi1>, vector<4x256xf32>
    %c1_i32_13 = arith.constant 1 : i32
    %59 = tpu.dynamic_rotate %58 by %c1_i32_13 dim 1 : vector<4x256xf32>, i32 -> vector<4x256xf32>
    %cst_14 = arith.constant 0.000000e+00 : f32
    %60 = vector.shape_cast %4 : vector<1x256xi1> to vector<1x256xi1>
    %61 = vector.broadcast %60 : vector<1x256xi1> to vector<4x256xi1>
    %62 = vector.broadcast %cst_14 : f32 to vector<4x256xf32>
    %63 = arith.select %61, %62, %59 : vector<4x256xi1>, vector<4x256xf32>
    %c255_i32_15 = arith.constant 255 : i32
    %64 = tpu.dynamic_rotate %58 by %c255_i32_15 dim 1 : vector<4x256xf32>, i32 -> vector<4x256xf32>
    %cst_16 = arith.constant 0.000000e+00 : f32
    %65 = vector.shape_cast %6 : vector<1x256xi1> to vector<1x256xi1>
    %66 = vector.broadcast %65 : vector<1x256xi1> to vector<4x256xi1>
    %67 = vector.broadcast %cst_16 : f32 to vector<4x256xf32>
    %68 = arith.select %66, %67, %64 : vector<4x256xi1>, vector<4x256xf32>
    %69 = tpu.concatenate %63, %58, %68 in 0 : vector<4x256xf32>, vector<4x256xf32>, vector<4x256xf32> -> vector<12x256xf32>
    %c0_17 = arith.constant 0 : index
    %c0_18 = arith.constant 0 : index
    %70 = vector.load %arg2[%c0_17, %c0_18] : memref<8x14xf32, #tpu.memory_space<vmem>>, vector<8x14xf32>
    %71 = vector.extract_strided_slice %70 {offsets = [0, 0], sizes = [8, 12], strides = [1, 1]} : vector<8x14xf32> to vector<8x12xf32>
    %cst_19 = arith.constant dense<0.000000e+00> : vector<8x256xf32>
    %72 = tpu.matmul %71, %69, %cst_19 {dimension_numbers = #tpu.dot_dimension_numbers<[1], [0], [0], [1], [0, 0, 1, 1], [], []>} : vector<8x12xf32>, vector<12x256xf32>, vector<8x256xf32> -> vector<8x256xf32>
    %73 = vector.extract_strided_slice %70 {offsets = [0, 12], sizes = [8, 1], strides = [1, 1]} : vector<8x14xf32> to vector<8x1xf32>
    %74 = vector.extract_strided_slice %70 {offsets = [0, 13], sizes = [8, 1], strides = [1, 1]} : vector<8x14xf32> to vector<8x1xf32>
    %cst_20 = arith.constant dense<0.000000e+00> : vector<8xf32>
    %75 = vector.multi_reduction <add>, %72, %cst_20 [1] : vector<8x256xf32> to vector<8xf32>
    %76 = vector.shape_cast %75 : vector<8xf32> to vector<8x1xf32>
    %cst_21 = arith.constant 3.906250e-03 : f32
    %77 = vector.broadcast %cst_21 : f32 to vector<8x1xf32>
    %78 = arith.mulf %76, %77 : vector<8x1xf32>
    %79 = arith.mulf %72, %72 : vector<8x256xf32>
    %cst_22 = arith.constant dense<0.000000e+00> : vector<8xf32>
    %80 = vector.multi_reduction <add>, %79, %cst_22 [1] : vector<8x256xf32> to vector<8xf32>
    %81 = vector.shape_cast %80 : vector<8xf32> to vector<8x1xf32>
    %cst_23 = arith.constant 3.906250e-03 : f32
    %82 = vector.broadcast %cst_23 : f32 to vector<8x1xf32>
    %83 = arith.mulf %81, %82 : vector<8x1xf32>
    %84 = arith.mulf %78, %78 : vector<8x1xf32>
    %85 = arith.subf %83, %84 : vector<8x1xf32>
    %cst_24 = arith.constant 0.000000e+00 : f32
    %86 = vector.broadcast %cst_24 : f32 to vector<8x1xf32>
    %87 = arith.maximumf %85, %86 : vector<8x1xf32>
    %cst_25 = arith.constant 9.99999974E-6 : f32
    %88 = vector.broadcast %cst_25 : f32 to vector<8x1xf32>
    %89 = arith.addf %87, %88 : vector<8x1xf32>
    %90 = math.rsqrt %89 : vector<8x1xf32>
    %91 = arith.mulf %73, %90 : vector<8x1xf32>
    %92 = arith.mulf %78, %91 : vector<8x1xf32>
    %93 = arith.subf %74, %92 : vector<8x1xf32>
    %94 = vector.broadcast %91 : vector<8x1xf32> to vector<8x256xf32>
    %95 = arith.mulf %72, %94 : vector<8x256xf32>
    %96 = vector.broadcast %93 : vector<8x1xf32> to vector<8x256xf32>
    %97 = arith.addf %95, %96 : vector<8x256xf32>
    %cst_26 = arith.constant 0.000000e+00 : f32
    %98 = vector.broadcast %cst_26 : f32 to vector<8x256xf32>
    %99 = arith.cmpf oge, %97, %98 : vector<8x256xf32>
    %cst_27 = arith.constant 0.00999999977 : f32
    %100 = vector.broadcast %cst_27 : f32 to vector<8x256xf32>
    %101 = arith.mulf %100, %97 : vector<8x256xf32>
    %102 = arith.select %99, %97, %101 : vector<8x256xi1>, vector<8x256xf32>
    %103 = vector.extract_strided_slice %102 {offsets = [0, 0], sizes = [1, 128], strides = [1, 1]} : vector<8x256xf32> to vector<1x128xf32>
    %104 = vector.extract_strided_slice %102 {offsets = [1, 0], sizes = [1, 128], strides = [1, 1]} : vector<8x256xf32> to vector<1x128xf32>
    %105 = vector.extract_strided_slice %102 {offsets = [2, 0], sizes = [1, 128], strides = [1, 1]} : vector<8x256xf32> to vector<1x128xf32>
    %106 = vector.extract_strided_slice %102 {offsets = [3, 0], sizes = [1, 128], strides = [1, 1]} : vector<8x256xf32> to vector<1x128xf32>
    %107 = vector.extract_strided_slice %102 {offsets = [4, 0], sizes = [1, 128], strides = [1, 1]} : vector<8x256xf32> to vector<1x128xf32>
    %108 = vector.extract_strided_slice %102 {offsets = [5, 0], sizes = [1, 128], strides = [1, 1]} : vector<8x256xf32> to vector<1x128xf32>
    %109 = vector.extract_strided_slice %102 {offsets = [6, 0], sizes = [1, 128], strides = [1, 1]} : vector<8x256xf32> to vector<1x128xf32>
    %110 = vector.extract_strided_slice %102 {offsets = [7, 0], sizes = [1, 128], strides = [1, 1]} : vector<8x256xf32> to vector<1x128xf32>
    %111 = tpu.concatenate %103, %104, %105, %106, %107, %108, %109, %110 in 1 : vector<1x128xf32>, vector<1x128xf32>, vector<1x128xf32>, vector<1x128xf32>, vector<1x128xf32>, vector<1x128xf32>, vector<1x128xf32>, vector<1x128xf32> -> vector<1x1024xf32>
    %112 = vector.extract_strided_slice %102 {offsets = [0, 128], sizes = [1, 128], strides = [1, 1]} : vector<8x256xf32> to vector<1x128xf32>
    %113 = vector.extract_strided_slice %102 {offsets = [1, 128], sizes = [1, 128], strides = [1, 1]} : vector<8x256xf32> to vector<1x128xf32>
    %114 = vector.extract_strided_slice %102 {offsets = [2, 128], sizes = [1, 128], strides = [1, 1]} : vector<8x256xf32> to vector<1x128xf32>
    %115 = vector.extract_strided_slice %102 {offsets = [3, 128], sizes = [1, 128], strides = [1, 1]} : vector<8x256xf32> to vector<1x128xf32>
    %116 = vector.extract_strided_slice %102 {offsets = [4, 128], sizes = [1, 128], strides = [1, 1]} : vector<8x256xf32> to vector<1x128xf32>
    %117 = vector.extract_strided_slice %102 {offsets = [5, 128], sizes = [1, 128], strides = [1, 1]} : vector<8x256xf32> to vector<1x128xf32>
    %118 = vector.extract_strided_slice %102 {offsets = [6, 128], sizes = [1, 128], strides = [1, 1]} : vector<8x256xf32> to vector<1x128xf32>
    %119 = vector.extract_strided_slice %102 {offsets = [7, 128], sizes = [1, 128], strides = [1, 1]} : vector<8x256xf32> to vector<1x128xf32>
    %120 = tpu.concatenate %112, %113, %114, %115, %116, %117, %118, %119 in 1 : vector<1x128xf32>, vector<1x128xf32>, vector<1x128xf32>, vector<1x128xf32>, vector<1x128xf32>, vector<1x128xf32>, vector<1x128xf32>, vector<1x128xf32> -> vector<1x1024xf32>
    %121 = tpu.concatenate %111, %120 in 0 : vector<1x1024xf32>, vector<1x1024xf32> -> vector<2x1024xf32>
    %c0_28 = arith.constant 0 : index
    %c0_29 = arith.constant 0 : index
    %122 = vector.load %arg3[%c0_28, %c0_29] : memref<10x1024xf32, #tpu.memory_space<vmem>>, vector<10x1024xf32>
    %cst_30 = arith.constant dense<0.000000e+00> : vector<2x10xf32>
    %123 = tpu.matmul %121, %122, %cst_30 {dimension_numbers = #tpu.dot_dimension_numbers<[1], [1], [0], [0], [0, 0, 1, 0], [], []>} : vector<2x1024xf32>, vector<10x1024xf32>, vector<2x10xf32> -> vector<2x10xf32>
    %c0_31 = arith.constant 0 : index
    %c0_32 = arith.constant 0 : index
    %124 = vector.load %arg4[%c0_31, %c0_32] : memref<1x10xf32, #tpu.memory_space<vmem>>, vector<1x10xf32>
    %125 = vector.broadcast %124 : vector<1x10xf32> to vector<2x10xf32>
    %126 = arith.addf %123, %125 : vector<2x10xf32>
    %c0_33 = arith.constant 0 : index
    %c0_34 = arith.constant 0 : index
    %127 = vector.load %arg5[%c0_33, %c0_34] : memref<2x10xf32, #tpu.memory_space<vmem>>, vector<2x10xf32>
    tpu.vector_store %arg5[%c0_33, %c0_34], %126 {strides = array<i32>} : memref<2x10xf32, #tpu.memory_space<vmem>>, vector<2x10xf32>,
    return
  }
}

</mosaic_0001>

<llo_original>
// kernel: fecnn_forward.1
$region0: #{fecnn_forward.1}
  #allocation0 [shape = 'u32[]', space=smem, size = 0x4, offset = 0x4, fixed_abs, tag = 'smem constant byte address 0x4 - core index']
  #allocation1 [shape = 'u32[144,128]{1,0:T(1,128)}', space=vmem, size = 0x12000, scoped, tag = 'internal scratch']
  %s0 = inlined_call_operand.hbm [shape: f32[1,256], index: 0, kind: input, shape index: {}]
  %s1 = inlined_call_operand.hbm [shape: f32[4,5], index: 1, kind: input, shape index: {}]
  %s2 = inlined_call_operand.hbm [shape: f32[8,14], index: 2, kind: input, shape index: {}]
  %s3 = inlined_call_operand.hbm [shape: f32[10,1024], index: 3, kind: input, shape index: {}]
  %s4 = inlined_call_operand.vmem [shape: f32[1,10], index: 4, kind: input, shape index: {}]
  %s5 = inlined_call_operand.hbm [shape: f32[2,10], index: 5, kind: output, shape index: {}]
  %s6 = sld [smem:[#allocation0]]
  $region46: #{fecnn_forward.1} parent=0
    _
  %s8 = ssub.s32 1, %s6
  %s9 = scalar_select 0, %s8, %s6
  $region1: #{fecnn_forward.1} parent=0
    #allocation2 [shape = 'u8[1024]{0}', space=vmem, size = 0x400, scoped, tag = 'input window, operand 0, single buffered']
    #allocation3 [shape = 's32[1]{0}', space=sflag, size = 0x4, scoped, tag = 'scoped memory for fecnn_forward.1']
    #allocation4 [shape = 's32[1]{0}', space=sflag, size = 0x4, scoped, tag = 'scoped memory for fecnn_forward.1']
    #allocation5 [shape = 'u8[2048]{0}', space=vmem, size = 0x800, scoped, tag = 'input window, operand 1, single buffered']
    #allocation6 [shape = 's32[1]{0}', space=sflag, size = 0x4, scoped, tag = 'scoped memory for fecnn_forward.1']
    #allocation7 [shape = 'u8[4096]{0}', space=vmem, size = 0x1000, scoped, tag = 'input window, operand 2, single buffered']
    #allocation8 [shape = 'u8[65536]{0}', space=vmem, size = 0x10000, scoped, tag = 'input window, operand 3, single buffered']
    #allocation9 [shape = 's32[1]{0}', space=sflag, size = 0x4, scoped, tag = 'scoped memory for fecnn_forward.1']
    #allocation10 [shape = 'u8[1024]{0}', space=vmem, size = 0x400, scoped, tag = 'output window, operand 0, single buffered']
    %10 = vsyncpa [#allocation3], 0
    %11 = vsyncpa [#allocation6], 0
    %12 = vsyncpa [#allocation9], 0
    %13 = vsyncpa [#allocation4], 0
    // Predicated region
    $region2: #{fecnn_forward.1} parent=1 // pred_check
      _
    $region3: #{fecnn_forward.1} parent=1 // pred_check_branch
      %15 = sbr.rel (0) target = $region5
    $region4: #{fecnn_forward.1} parent=1 // pred_region
      %s17 = ssub.s32 32, 32
      %18 = vsyncadd [#allocation3], %s17
      %s20 = sshll.u32 [#allocation2], 4
      %s21 = int_to_ptr.vmem [resolvable:$true] %s20
      %23 = dma.hbm_to_vmem [thread:$0]  %s0, 32, %s21, [#allocation3]
    $region5: #{fecnn_forward.1} parent=1 // pred_fallthru
      _
    // Predicated region
    $region6: #{fecnn_forward.1} parent=1 // pred_check
      _
    $region7: #{fecnn_forward.1} parent=1 // pred_check_branch
      %25 = sbr.rel (0) target = $region9
    $region8: #{fecnn_forward.1} parent=1 // pred_region
      %s27 = ssub.s32 64, 64
      %28 = vsyncadd [#allocation6], %s27
      %s30 = sshll.u32 [#allocation5], 4
      %s31 = int_to_ptr.vmem [resolvable:$true] %s30
      %33 = dma.hbm_to_vmem [thread:$0]  %s1, 64, %s31, [#allocation6]
    $region9: #{fecnn_forward.1} parent=1 // pred_fallthru
      _
    // Predicated region
    $region10: #{fecnn_forward.1} parent=1 // pred_check
      _
    $region11: #{fecnn_forward.1} parent=1 // pred_check_branch
      %35 = sbr.rel (0) target = $region13
    $region12: #{fecnn_forward.1} parent=1 // pred_region
      %s37 = ssub.s32 128, 128
      %38 = vsyncadd [#allocation6], %s37
      %s40 = sshll.u32 [#allocation7], 4
      %s41 = int_to_ptr.vmem [resolvable:$true] %s40
      %43 = dma.hbm_to_vmem [thread:$0]  %s2, 128, %s41, [#allocation6]
    $region13: #{fecnn_forward.1} parent=1 // pred_fallthru
      _
    // Predicated region
    $region14: #{fecnn_forward.1} parent=1 // pred_check
      _
    $region15: #{fecnn_forward.1} parent=1 // pred_check_branch
      %45 = sbr.rel (0) target = $region17
    $region16: #{fecnn_forward.1} parent=1 // pred_region
      %s47 = ssub.s32 2048, 2048
      %48 = vsyncadd [#allocation9], %s47
      %s49 = sshll.u32 [#allocation8], 4
      %s50 = int_to_ptr.vmem [resolvable:$true] %s49
      %55 = dma.hbm_to_vmem [thread:$0]  %s3, 2048, %s50, [#allocation9], 1024, 1024, 64
    $region17: #{fecnn_forward.1} parent=1 // pred_fallthru
      _
    // Predicated region
    $region18: #{fecnn_forward.1} parent=1 // pred_check
      _
    $region19: #{fecnn_forward.1} parent=1 // pred_check_branch
      %57 = sbr.rel (0) target = $region21
    $region20: #{fecnn_forward.1} parent=1 // pred_region
      _
    $region21: #{fecnn_forward.1} parent=1 // pred_fallthru
      _
    // Predicated region
    $region22: #{fecnn_forward.1} parent=1 // pred_check
      _
    $region23: #{fecnn_forward.1} parent=1 // pred_check_branch
      %59 = sbr.rel (0) target = $region25
    $region24: #{fecnn_forward.1} parent=1 // pred_region
      %60 = dma.done [#allocation3], 32
    $region25: #{fecnn_forward.1} parent=1 // pred_fallthru
      _
    // Predicated region
    $region26: #{fecnn_forward.1} parent=1 // pred_check
      _
    $region27: #{fecnn_forward.1} parent=1 // pred_check_branch
      %62 = sbr.rel (0) target = $region29
    $region28: #{fecnn_forward.1} parent=1 // pred_region
      %63 = dma.done [#allocation6], 64
    $region29: #{fecnn_forward.1} parent=1 // pred_fallthru
      _
    // Predicated region
    $region30: #{fecnn_forward.1} parent=1 // pred_check
      _
    $region31: #{fecnn_forward.1} parent=1 // pred_check_branch
      %65 = sbr.rel (0) target = $region33
    $region32: #{fecnn_forward.1} parent=1 // pred_region
      %66 = dma.done [#allocation6], 128
    $region33: #{fecnn_forward.1} parent=1 // pred_fallthru
      _
    // Predicated region
    $region34: #{fecnn_forward.1} parent=1 // pred_check
      _
    $region35: #{fecnn_forward.1} parent=1 // pred_check_branch
      %68 = sbr.rel (0) target = $region37
    $region36: #{fecnn_forward.1} parent=1 // pred_region
      %69 = dma.done [#allocation9], 2048
    $region37: #{fecnn_forward.1} parent=1 // pred_fallthru
      _
    %v70 = vlaneseq
    %v71 = vand.u32 %v70, 127
    %v72 = vadd.s32 %v71, 128
    %v73 = vand.u32 %v71, 127
    %v74 = vand.u32 %v72, 127
    %vm75 = vcmp.eq.s32.totalorder %v73, 0
    %vm76 = vcmp.eq.s32.totalorder %v74, 0
    %vm77 = vcmp.eq.s32.totalorder %v73, 127
    %vm78 = vcmp.eq.s32.totalorder %v74, 127
    %v79 = vld [vmem:[#allocation2] sm:$0x3]
    %v81 = vlaneseq
    %v82 = vshrl.u32 %v81, 7
    %v83 = vsub.s32 0, %v82
    %v84 = vrot.slane %v79, %v83
    %v85 = vlaneseq
    %v86 = vshrl.u32 %v85, 7
    %v87 = vsub.s32 1, %v86
    %v88 = vrot.slane %v79, %v87
    %91 = vrot.lane.b32.xlu0 %v84, 1
    %v92 = vpop.permute.xlu0 %91
    %93 = vrot.lane.b32.xlu0 %v88, 1
    %v94 = vpop.permute.xlu0 %93
    %vm95 = vcmp.lt.s32.totalorder %v71, 1
    %v96 = vsel %vm95, %v92, %v94
    %v97 = vsel %vm95, %v94, %v92
    %v98 = vsel %vm75, 0.0, %v97
    %v99 = vsel %vm76, 0.0, %v96
    %100 = vrot.lane.b32.xlu0 %v84, 127
    %v101 = vpop.permute.xlu0 %100
    %102 = vrot.lane.b32.xlu0 %v88, 127
    %v103 = vpop.permute.xlu0 %102
    %vm104 = vcmp.lt.s32.totalorder %v71, 127
    %v105 = vsel %vm104, %v101, %v103
    %v106 = vsel %vm104, %v103, %v101
    %v107 = vsel %vm77, 0.0, %v105
    %v108 = vsel %vm78, 0.0, %v106
    %v109 = vld [vmem:[#allocation5] sm:$0xf]
    %111 = vset.pattern.permute.xlu0 0
    %112 = vperm.xlu0 %111, %v109
    %v113 = vpop.permute.xlu0 %112
    %v115 = vlaneseq
    %v116 = vshrl.u32 %v115, 7
    %v117 = vsub.s32 0, %v116
    %v118 = vrot.slane %v98, %v117
    %v119 = vlaneseq
    %v120 = vshrl.u32 %v119, 7
    %v121 = vsub.s32 0, %v120
    %v122 = vrot.slane %v99, %v121
    %v123 = vmul.f32 %v113, %v118
    %v124 = vmul.f32 %v113, %v122
    %125 = vset.pattern.permute.xlu0 1
    %126 = vperm.xlu0 %125, %v109
    %v127 = vpop.permute.xlu0 %126
    %v129 = vmul.f32 %v127, %v84
    %v130 = vmul.f32 %v127, %v88
    %v131 = vadd.f32 %v123, %v129
    %v132 = vadd.f32 %v124, %v130
    %133 = vset.pattern.permute.xlu0 2
    %134 = vperm.xlu0 %133, %v109
    %v135 = vpop.permute.xlu0 %134
    %v137 = vlaneseq
    %v138 = vshrl.u32 %v137, 7
    %v139 = vsub.s32 0, %v138
    %v140 = vrot.slane %v107, %v139
    %v141 = vlaneseq
    %v142 = vshrl.u32 %v141, 7
    %v143 = vsub.s32 0, %v142
    %v144 = vrot.slane %v108, %v143
    %v145 = vmul.f32 %v135, %v140
    %v146 = vmul.f32 %v135, %v144
    %v147 = vadd.f32 %v131, %v145
    %v148 = vadd.f32 %v132, %v146
    %vm149 = vcmask 1043456
    %v150 = vsel %vm149, %v147, 0.0
    %v151 = vsel %vm149, %v148, 0.0
    %v152 = vadd.f32 %v150, %v151
    %153 = vadd.xlane.f32.xlu0 %v152
    %v154 = vpop.xlane.xlu0 %153
    %v155 = vmul.f32 %v154, 0.00390625
    %v156 = vmul.f32 %v147, %v147
    %v157 = vmul.f32 %v148, %v148
    %v158 = vsel %vm149, %v156, 0.0
    %v159 = vsel %vm149, %v157, 0.0
    %v160 = vadd.f32 %v158, %v159
    %161 = vadd.xlane.f32.xlu0 %v160
    %v162 = vpop.xlane.xlu0 %161
    %v163 = vmul.f32 %v162, 0.00390625
    %v164 = vmul.f32 %v155, %v155
    %v165 = vsub.f32 %v163, %v164
    %v166 = vmax.f32 %v165, 0.0
    %v167 = vadd.f32 %v166, 1e-05
    %v168 = vrsqrt.pop %v167
    %v169 = vmul.f32 %v109, %v168
    %v170 = vmul.f32 %v155, %v169
    %172 = vrot.lane.b32.xlu0 %v170, 1
    %v173 = vpop.permute.xlu0 %172
    %v175 = vsub.f32 %v109, %v173
    %177 = vset.pattern.permute.xlu0 3
    %178 = vperm.xlu0 %177, %v169
    %v179 = vpop.permute.xlu0 %178
    %v181 = vmul.f32 %v147, %v179
    %v182 = vmul.f32 %v148, %v179
    %184 = vset.pattern.permute.xlu0 4
    %185 = vperm.xlu0 %184, %v175
    %v186 = vpop.permute.xlu0 %185
    %v188 = vadd.f32 %v181, %v186
    %v189 = vadd.f32 %v182, %v186
    %vm190 = vcmp.ge.f32.partialorder %v188, 0.0
    %vm191 = vcmp.ge.f32.partialorder %v189, 0.0
    %v192 = vmul.f32 %v188, 0.01
    %v193 = vmul.f32 %v189, 0.01
    %v194 = vsel %vm190, %v188, %v192
    %v195 = vsel %vm191, %v189, %v193
    %196 = vrot.lane.b32.xlu0 %v194, 1
    %v197 = vpop.permute.xlu0 %196
    %198 = vrot.lane.b32.xlu0 %v195, 1
    %v199 = vpop.permute.xlu0 %198
    %v200 = vsel %vm95, %v197, %v199
    %v201 = vsel %vm95, %v199, %v197
    %v202 = vsel %vm75, 1, 0
    %v203 = vsel %vm76, 1, 0
    %vm204 = vcmp.eq.s32.totalorder %v202, 1
    %vm205 = vcmp.eq.s32.totalorder %v203, 1
    %v206 = vsel %vm204, 0.0, %v201
    %v207 = vsel %vm205, 0.0, %v200
    %208 = vrot.lane.b32.xlu0 %v194, 127
    %v209 = vpop.permute.xlu0 %208
    %210 = vrot.lane.b32.xlu0 %v195, 127
    %v211 = vpop.permute.xlu0 %210
    %v212 = vsel %vm104, %v209, %v211
    %v213 = vsel %vm104, %v211, %v209
    %v214 = vsel %vm77, 1, 0
    %v215 = vsel %vm78, 1, 0
    %vm216 = vcmp.eq.s32.totalorder %v214, 1
    %vm217 = vcmp.eq.s32.totalorder %v215, 1
    %v218 = vsel %vm216, 0.0, %v212
    %v219 = vsel %vm217, 0.0, %v213
    %v222 = vrot.slane %v194, 4
    %v223 = vrot.slane %v195, 4
    %v226 = vsel %vm149, %v206, %v222
    %v227 = vsel %vm149, %v207, %v223
    %v228 = vld [vmem:[#allocation7] sm:$0xff]
    %vm229 = vcmask 97280
    %v231 = vsel %vm229, %v228, 0
    %v234 = vsel %vm149, %v218, 0
    %v237 = vsel %vm149, %v219, 0
    %239 = vmatprep.subr.mxu0 0.0
    %240 = vmatpush1.msra.mxu0 0.0
    %241 = vmatprep.subr.mxu0 0.0
    %242 = vmatpush1.msra.mxu0 0.0
    %243 = vmatprep.subr.mxu0 0.0
    %244 = vmatpush1.msra.mxu0 0.0
    %245 = vmatprep.subr.mxu0 0.0
    %246 = vmatpush1.msra.mxu0 0.0
    %247 = vmatprep.subr.mxu0 0.0
    %248 = vmatpush1.msra.mxu0 0.0
    %249 = vmatprep.subr.mxu0 0.0
    %250 = vmatpush1.msra.mxu0 0.0
    %251 = vmatprep.subr.mxu0 0.0
    %252 = vmatpush1.msra.mxu0 0.0
    %253 = vmatprep.subr.mxu0 0.0
    %254 = vmatpush1.msra.mxu0 0.0
    %255 = vmatprep.subr.mxu0 0.0
    %256 = vmatpush1.msra.mxu0 0.0
    %257 = vmatprep.subr.mxu0 0.0
    %258 = vmatpush1.msra.mxu0 0.0
    %259 = vmatprep.subr.mxu0 0.0
    %260 = vmatpush1.msra.mxu0 0.0
    %261 = vmatprep.subr.mxu0 0.0
    %262 = vmatpush1.msra.mxu0 0.0
    %263 = vmatprep.subr.mxu0 0.0
    %264 = vmatpush1.msra.mxu0 0.0
    %265 = vmatprep.subr.mxu0 0.0
    %266 = vmatpush1.msra.mxu0 0.0
    %267 = vmatprep.subr.mxu0 %v237
    %268 = vmatpush1.msra.mxu0 %v234
    %269 = vmatprep.subr.mxu0 %v227
    %270 = vmatpush1.msra.mxu0 %v226
    %271 = vmatprep.subr.mxu0 0.0
    %272 = vmatpush2.msra.mxu0 0.0
    %273 = vmatprep.subr.mxu0 0.0
    %274 = vmatpush2.msra.mxu0 0.0
    %275 = vmatprep.subr.mxu0 0.0
    %276 = vmatpush2.msra.mxu0 0.0
    %277 = vmatprep.subr.mxu0 0.0
    %278 = vmatpush2.msra.mxu0 0.0
    %279 = vmatprep.subr.mxu0 0.0
    %280 = vmatpush2.msra.mxu0 0.0
    %281 = vmatprep.subr.mxu0 0.0
    %282 = vmatpush2.msra.mxu0 0.0
    %283 = vmatprep.subr.mxu0 0.0
    %284 = vmatpush2.msra.mxu0 0.0
    %285 = vmatprep.subr.mxu0 0.0
    %286 = vmatpush2.msra.mxu0 0.0
    %287 = vmatprep.subr.mxu0 0.0
    %288 = vmatpush2.msra.mxu0 0.0
    %289 = vmatprep.subr.mxu0 0.0
    %290 = vmatpush2.msra.mxu0 0.0
    %291 = vmatprep.subr.mxu0 0.0
    %292 = vmatpush2.msra.mxu0 0.0
    %293 = vmatprep.subr.mxu0 0.0
    %294 = vmatpush2.msra.mxu0 0.0
    %295 = vmatprep.subr.mxu0 0.0
    %296 = vmatpush2.msra.mxu0 0.0
    %297 = vmatprep.subr.mxu0 0.0
    %298 = vmatpush2.msra.mxu0 0.0
    %299 = vmatprep.subr.mxu0 0.0
    %300 = vmatpush2.msra.mxu0 0.0
    %301 = vmatprep.subr.mxu0 0.0
    %302 = vmatpush2.msra.mxu0 0.0
    %303 = vmatprep.mubr.f32.mxu0 0.0
    %304 = vmatmul.mubr.f32.gmra.mxu0 %v231
    %v305 = vpop.f32.mrf.mxu0
    %v306 = vadd.f32 0.0, %v305
    %v307 = vpop.f32.mrf.mxu0
    %v308 = vadd.f32 0.0, %v307
    %309 = vdwg.mxu0
    %v310 = vadd.f32 %v306, %v308
    %311 = vadd.xlane.f32.xlu0 %v310
    %v312 = vpop.xlane.xlu0 %311
    %v313 = vmul.f32 %v312, 0.00390625
    %v314 = vmul.f32 %v306, %v306
    %v315 = vmul.f32 %v308, %v308
    %v316 = vadd.f32 %v314, %v315
    %317 = vadd.xlane.f32.xlu0 %v316
    %v318 = vpop.xlane.xlu0 %317
    %v319 = vmul.f32 %v318, 0.00390625
    %v320 = vmul.f32 %v313, %v313
    %v321 = vsub.f32 %v319, %v320
    %v322 = vmax.f32 %v321, 0.0
    %v323 = vadd.f32 %v322, 1e-05
    %v324 = vrsqrt.pop %v323
    %v325 = vmul.f32 %v228, %v324
    %v326 = vmul.f32 %v313, %v325
    %328 = vrot.lane.b32.xlu0 %v326, 1
    %v329 = vpop.permute.xlu0 %328
    %v331 = vsub.f32 %v228, %v329
    %333 = vset.pattern.permute.xlu0 12
    %334 = vperm.xlu0 %333, %v325
    %v335 = vpop.permute.xlu0 %334
    %v337 = vmul.f32 %v306, %v335
    %v338 = vmul.f32 %v308, %v335
    %340 = vset.pattern.permute.xlu0 13
    %341 = vperm.xlu0 %340, %v331
    %v342 = vpop.permute.xlu0 %341
    %v344 = vadd.f32 %v337, %v342
    %v345 = vadd.f32 %v338, %v342
    %vm346 = vcmp.ge.f32.partialorder %v344, 0.0
    %vm347 = vcmp.ge.f32.partialorder %v345, 0.0
    %v348 = vmul.f32 %v344, 0.01
    %v349 = vmul.f32 %v345, 0.01
    %v350 = vsel %vm346, %v344, %v348
    %v351 = vsel %vm347, %v345, %v349
    %v353 = vrot.slane %v350, 1
    %v355 = vrot.slane %v350, 2
    %v357 = vrot.slane %v350, 3
    %v359 = vrot.slane %v350, 4
    %v361 = vrot.slane %v350, 5
    %v363 = vrot.slane %v350, 6
    %v365 = vrot.slane %v350, 7
    %v368 = vrot.slane %v351, 1
    %v369 = vrot.slane %v351, 2
    %v370 = vrot.slane %v351, 3
    %v371 = vrot.slane %v351, 4
    %v372 = vrot.slane %v351, 5
    %v373 = vrot.slane %v351, 6
    %v374 = vrot.slane %v351, 7
    %v375 = vrot.slane %v368, 7
    %v376 = vrot.slane %v369, 7
    %v377 = vrot.slane %v370, 7
    %v378 = vrot.slane %v371, 7
    %v379 = vrot.slane %v372, 7
    %v380 = vrot.slane %v373, 7
    %v381 = vrot.slane %v374, 7
    %vm390 = vcmask 1040384
    %v391 = vsel %vm390, %v350, %v374
    %v392 = vsel %vm390, %v353, %v375
    %v393 = vsel %vm390, %v355, %v376
    %v394 = vsel %vm390, %v357, %v377
    %v395 = vsel %vm390, %v359, %v378
    %v396 = vsel %vm390, %v361, %v379
    %v397 = vsel %vm390, %v363, %v380
    %v398 = vsel %vm390, %v365, %v381
    %v399 = vld [vmem:[#allocation8] sm:$0xff]
    %v400 = vld [vmem:[#allocation8 + $0x8] sm:$0xff]
    %v401 = vld [vmem:[#allocation8 + $0x10] sm:$0xff]
    %v402 = vld [vmem:[#allocation8 + $0x18] sm:$0xff]
    %v403 = vld [vmem:[#allocation8 + $0x20] sm:$0xff]
    %v404 = vld [vmem:[#allocation8 + $0x28] sm:$0xff]
    %v405 = vld [vmem:[#allocation8 + $0x30] sm:$0xff]
    %v406 = vld [vmem:[#allocation8 + $0x38] sm:$0xff]
    %v407 = vld [vmem:[#allocation8 + $0x40] sm:$0x3]
    %v408 = vld [vmem:[#allocation8 + $0x48] sm:$0x3]
    %v409 = vld [vmem:[#allocation8 + $0x50] sm:$0x3]
    %v410 = vld [vmem:[#allocation8 + $0x58] sm:$0x3]
    %v411 = vld [vmem:[#allocation8 + $0x60] sm:$0x3]
    %v412 = vld [vmem:[#allocation8 + $0x68] sm:$0x3]
    %v413 = vld [vmem:[#allocation8 + $0x70] sm:$0x3]
    %v414 = vld [vmem:[#allocation8 + $0x78] sm:$0x3]
    %v415 = vld [vmem:[%s4] sm:$0x1]
    %v417 = vlaneseq
    %v418 = vshrl.u32 %v417, 7
    %v419 = vsub.s32 0, %v418
    %v420 = vrot.slane %v415, %v419
    %422 = vmatprep.subr.mxu0 0.0
    %423 = vmatpush1.xpose.msra.mxu0 0.0
    %424 = vmatprep.subr.mxu0 0.0
    %425 = vmatpush1.xpose.msra.mxu0 0.0
    %426 = vmatprep.subr.mxu0 0.0
    %427 = vmatpush1.xpose.msra.mxu0 0.0
    %428 = vmatprep.subr.mxu0 0.0
    %429 = vmatpush1.xpose.msra.mxu0 0.0
    %430 = vmatprep.subr.mxu0 0.0
    %431 = vmatpush1.xpose.msra.mxu0 0.0
    %432 = vmatprep.subr.mxu0 0.0
    %433 = vmatpush1.xpose.msra.mxu0 0.0
    %434 = vmatprep.subr.mxu0 0.0
    %435 = vmatpush1.xpose.msra.mxu0 0.0
    %436 = vmatprep.subr.mxu0 0.0
    %437 = vmatpush1.xpose.msra.mxu0 0.0
    %438 = vmatprep.subr.mxu0 0.0
    %439 = vmatpush1.xpose.msra.mxu0 0.0
    %440 = vmatprep.subr.mxu0 0.0
    %441 = vmatpush1.xpose.msra.mxu0 0.0
    %442 = vmatprep.subr.mxu0 0.0
    %443 = vmatpush1.xpose.msra.mxu0 0.0
    %444 = vmatprep.subr.mxu0 0.0
    %445 = vmatpush1.xpose.msra.mxu0 0.0
    %446 = vmatprep.subr.mxu0 0.0
    %447 = vmatpush1.xpose.msra.mxu0 0.0
    %448 = vmatprep.subr.mxu0 0.0
    %449 = vmatpush1.xpose.msra.mxu0 0.0
    %450 = vmatprep.subr.mxu0 %v408
    %451 = vmatpush1.xpose.msra.mxu0 %v407
    %452 = vmatprep.subr.mxu0 %v400
    %453 = vmatpush1.xpose.msra.mxu0 %v399
    %454 = vmatprep.subr.mxu0 0.0
    %455 = vmatpush2.xpose.msra.mxu0 0.0
    %456 = vmatprep.subr.mxu0 0.0
    %457 = vmatpush2.xpose.msra.mxu0 0.0
    %458 = vmatprep.subr.mxu0 0.0
    %459 = vmatpush2.xpose.msra.mxu0 0.0
    %460 = vmatprep.subr.mxu0 0.0
    %461 = vmatpush2.xpose.msra.mxu0 0.0
    %462 = vmatprep.subr.mxu0 0.0
    %463 = vmatpush2.xpose.msra.mxu0 0.0
    %464 = vmatprep.subr.mxu0 0.0
    %465 = vmatpush2.xpose.msra.mxu0 0.0
    %466 = vmatprep.subr.mxu0 0.0
    %467 = vmatpush2.xpose.msra.mxu0 0.0
    %468 = vmatprep.subr.mxu0 0.0
    %469 = vmatpush2.xpose.msra.mxu0 0.0
    %470 = vmatprep.subr.mxu0 0.0
    %471 = vmatpush2.xpose.msra.mxu0 0.0
    %472 = vmatprep.subr.mxu0 0.0
    %473 = vmatpush2.xpose.msra.mxu0 0.0
    %474 = vmatprep.subr.mxu0 0.0
    %475 = vmatpush2.xpose.msra.mxu0 0.0
    %476 = vmatprep.subr.mxu0 0.0
    %477 = vmatpush2.xpose.msra.mxu0 0.0
    %478 = vmatprep.subr.mxu0 0.0
    %479 = vmatpush2.xpose.msra.mxu0 0.0
    %480 = vmatprep.subr.mxu0 0.0
    %481 = vmatpush2.xpose.msra.mxu0 0.0
    %482 = vmatprep.subr.mxu0 0.0
    %483 = vmatpush2.xpose.msra.mxu0 0.0
    %484 = vmatprep.subr.mxu0 0.0
    %485 = vmatpush2.xpose.msra.mxu0 0.0
    %486 = vmatprep.mubr.f32.mxu0 %v392
    %487 = vmatmul.mubr.f32.gmra.mxu0 %v391
    %v488 = vpop.f32.mrf.mxu0
    %v489 = vadd.f32 %v420, %v488
    %v490 = vpop.f32.mrf.mxu0
    %491 = vdwg.mxu0
    %492 = vmatprep.subr.mxu0 0.0
    %493 = vmatpush1.xpose.msra.mxu0 0.0
    %494 = vmatprep.subr.mxu0 0.0
    %495 = vmatpush1.xpose.msra.mxu0 0.0
    %496 = vmatprep.subr.mxu0 0.0
    %497 = vmatpush1.xpose.msra.mxu0 0.0
    %498 = vmatprep.subr.mxu0 0.0
    %499 = vmatpush1.xpose.msra.mxu0 0.0
    %500 = vmatprep.subr.mxu0 0.0
    %501 = vmatpush1.xpose.msra.mxu0 0.0
    %502 = vmatprep.subr.mxu0 0.0
    %503 = vmatpush1.xpose.msra.mxu0 0.0
    %504 = vmatprep.subr.mxu0 0.0
    %505 = vmatpush1.xpose.msra.mxu0 0.0
    %506 = vmatprep.subr.mxu0 0.0
    %507 = vmatpush1.xpose.msra.mxu0 0.0
    %508 = vmatprep.subr.mxu0 0.0
    %509 = vmatpush1.xpose.msra.mxu0 0.0
    %510 = vmatprep.subr.mxu0 0.0
    %511 = vmatpush1.xpose.msra.mxu0 0.0
    %512 = vmatprep.subr.mxu0 0.0
    %513 = vmatpush1.xpose.msra.mxu0 0.0
    %514 = vmatprep.subr.mxu0 0.0
    %515 = vmatpush1.xpose.msra.mxu0 0.0
    %516 = vmatprep.subr.mxu0 0.0
    %517 = vmatpush1.xpose.msra.mxu0 0.0
    %518 = vmatprep.subr.mxu0 0.0
    %519 = vmatpush1.xpose.msra.mxu0 0.0
    %520 = vmatprep.subr.mxu0 %v410
    %521 = vmatpush1.xpose.msra.mxu0 %v409
    %522 = vmatprep.subr.mxu0 %v402
    %523 = vmatpush1.xpose.msra.mxu0 %v401
    %524 = vmatprep.subr.mxu0 0.0
    %525 = vmatpush2.xpose.msra.mxu0 0.0
    %526 = vmatprep.subr.mxu0 0.0
    %527 = vmatpush2.xpose.msra.mxu0 0.0
    %528 = vmatprep.subr.mxu0 0.0
    %529 = vmatpush2.xpose.msra.mxu0 0.0
    %530 = vmatprep.subr.mxu0 0.0
    %531 = vmatpush2.xpose.msra.mxu0 0.0
    %532 = vmatprep.subr.mxu0 0.0
    %533 = vmatpush2.xpose.msra.mxu0 0.0
    %534 = vmatprep.subr.mxu0 0.0
    %535 = vmatpush2.xpose.msra.mxu0 0.0
    %536 = vmatprep.subr.mxu0 0.0
    %537 = vmatpush2.xpose.msra.mxu0 0.0
    %538 = vmatprep.subr.mxu0 0.0
    %539 = vmatpush2.xpose.msra.mxu0 0.0
    %540 = vmatprep.subr.mxu0 0.0
    %541 = vmatpush2.xpose.msra.mxu0 0.0
    %542 = vmatprep.subr.mxu0 0.0
    %543 = vmatpush2.xpose.msra.mxu0 0.0
    %544 = vmatprep.subr.mxu0 0.0
    %545 = vmatpush2.xpose.msra.mxu0 0.0
    %546 = vmatprep.subr.mxu0 0.0
    %547 = vmatpush2.xpose.msra.mxu0 0.0
    %548 = vmatprep.subr.mxu0 0.0
    %549 = vmatpush2.xpose.msra.mxu0 0.0
    %550 = vmatprep.subr.mxu0 0.0
    %551 = vmatpush2.xpose.msra.mxu0 0.0
    %552 = vmatprep.subr.mxu0 0.0
    %553 = vmatpush2.xpose.msra.mxu0 0.0
    %554 = vmatprep.subr.mxu0 0.0
    %555 = vmatpush2.xpose.msra.mxu0 0.0
    %556 = vmatprep.mubr.f32.mxu0 %v394
    %557 = vmatmul.mubr.f32.gmra.mxu0 %v393
    %v558 = vpop.f32.mrf.mxu0
    %v559 = vadd.f32 %v489, %v558
    %v560 = vpop.f32.mrf.mxu0
    %561 = vdwg.mxu0
    %562 = vmatprep.subr.mxu0 0.0
    %563 = vmatpush1.xpose.msra.mxu0 0.0
    %564 = vmatprep.subr.mxu0 0.0
    %565 = vmatpush1.xpose.msra.mxu0 0.0
    %566 = vmatprep.subr.mxu0 0.0
    %567 = vmatpush1.xpose.msra.mxu0 0.0
    %568 = vmatprep.subr.mxu0 0.0
    %569 = vmatpush1.xpose.msra.mxu0 0.0
    %570 = vmatprep.subr.mxu0 0.0
    %571 = vmatpush1.xpose.msra.mxu0 0.0
    %572 = vmatprep.subr.mxu0 0.0
    %573 = vmatpush1.xpose.msra.mxu0 0.0
    %574 = vmatprep.subr.mxu0 0.0
    %575 = vmatpush1.xpose.msra.mxu0 0.0
    %576 = vmatprep.subr.mxu0 0.0
    %577 = vmatpush1.xpose.msra.mxu0 0.0
    %578 = vmatprep.subr.mxu0 0.0
    %579 = vmatpush1.xpose.msra.mxu0 0.0
    %580 = vmatprep.subr.mxu0 0.0
    %581 = vmatpush1.xpose.msra.mxu0 0.0
    %582 = vmatprep.subr.mxu0 0.0
    %583 = vmatpush1.xpose.msra.mxu0 0.0
    %584 = vmatprep.subr.mxu0 0.0
    %585 = vmatpush1.xpose.msra.mxu0 0.0
    %586 = vmatprep.subr.mxu0 0.0
    %587 = vmatpush1.xpose.msra.mxu0 0.0
    %588 = vmatprep.subr.mxu0 0.0
    %589 = vmatpush1.xpose.msra.mxu0 0.0
    %590 = vmatprep.subr.mxu0 %v412
    %591 = vmatpush1.xpose.msra.mxu0 %v411
    %592 = vmatprep.subr.mxu0 %v404
    %593 = vmatpush1.xpose.msra.mxu0 %v403
    %594 = vmatprep.subr.mxu0 0.0
    %595 = vmatpush2.xpose.msra.mxu0 0.0
    %596 = vmatprep.subr.mxu0 0.0
    %597 = vmatpush2.xpose.msra.mxu0 0.0
    %598 = vmatprep.subr.mxu0 0.0
    %599 = vmatpush2.xpose.msra.mxu0 0.0
    %600 = vmatprep.subr.mxu0 0.0
    %601 = vmatpush2.xpose.msra.mxu0 0.0
    %602 = vmatprep.subr.mxu0 0.0
    %603 = vmatpush2.xpose.msra.mxu0 0.0
    %604 = vmatprep.subr.mxu0 0.0
    %605 = vmatpush2.xpose.msra.mxu0 0.0
    %606 = vmatprep.subr.mxu0 0.0
    %607 = vmatpush2.xpose.msra.mxu0 0.0
    %608 = vmatprep.subr.mxu0 0.0
    %609 = vmatpush2.xpose.msra.mxu0 0.0
    %610 = vmatprep.subr.mxu0 0.0
    %611 = vmatpush2.xpose.msra.mxu0 0.0
    %612 = vmatprep.subr.mxu0 0.0
    %613 = vmatpush2.xpose.msra.mxu0 0.0
    %614 = vmatprep.subr.mxu0 0.0
    %615 = vmatpush2.xpose.msra.mxu0 0.0
    %616 = vmatprep.subr.mxu0 0.0
    %617 = vmatpush2.xpose.msra.mxu0 0.0
    %618 = vmatprep.subr.mxu0 0.0
    %619 = vmatpush2.xpose.msra.mxu0 0.0
    %620 = vmatprep.subr.mxu0 0.0
    %621 = vmatpush2.xpose.msra.mxu0 0.0
    %622 = vmatprep.subr.mxu0 0.0
    %623 = vmatpush2.xpose.msra.mxu0 0.0
    %624 = vmatprep.subr.mxu0 0.0
    %625 = vmatpush2.xpose.msra.mxu0 0.0
    %626 = vmatprep.mubr.f32.mxu0 %v396
    %627 = vmatmul.mubr.f32.gmra.mxu0 %v395
    %v628 = vpop.f32.mrf.mxu0
    %v629 = vadd.f32 %v559, %v628
    %v630 = vpop.f32.mrf.mxu0
    %631 = vdwg.mxu0
    %632 = vmatprep.subr.mxu0 0.0
    %633 = vmatpush1.xpose.msra.mxu0 0.0
    %634 = vmatprep.subr.mxu0 0.0
    %635 = vmatpush1.xpose.msra.mxu0 0.0
    %636 = vmatprep.subr.mxu0 0.0
    %637 = vmatpush1.xpose.msra.mxu0 0.0
    %638 = vmatprep.subr.mxu0 0.0
    %639 = vmatpush1.xpose.msra.mxu0 0.0
    %640 = vmatprep.subr.mxu0 0.0
    %641 = vmatpush1.xpose.msra.mxu0 0.0
    %642 = vmatprep.subr.mxu0 0.0
    %643 = vmatpush1.xpose.msra.mxu0 0.0
    %644 = vmatprep.subr.mxu0 0.0
    %645 = vmatpush1.xpose.msra.mxu0 0.0
    %646 = vmatprep.subr.mxu0 0.0
    %647 = vmatpush1.xpose.msra.mxu0 0.0
    %648 = vmatprep.subr.mxu0 0.0
    %649 = vmatpush1.xpose.msra.mxu0 0.0
    %650 = vmatprep.subr.mxu0 0.0
    %651 = vmatpush1.xpose.msra.mxu0 0.0
    %652 = vmatprep.subr.mxu0 0.0
    %653 = vmatpush1.xpose.msra.mxu0 0.0
    %654 = vmatprep.subr.mxu0 0.0
    %655 = vmatpush1.xpose.msra.mxu0 0.0
    %656 = vmatprep.subr.mxu0 0.0
    %657 = vmatpush1.xpose.msra.mxu0 0.0
    %658 = vmatprep.subr.mxu0 0.0
    %659 = vmatpush1.xpose.msra.mxu0 0.0
    %660 = vmatprep.subr.mxu0 %v414
    %661 = vmatpush1.xpose.msra.mxu0 %v413
    %662 = vmatprep.subr.mxu0 %v406
    %663 = vmatpush1.xpose.msra.mxu0 %v405
    %664 = vmatprep.subr.mxu0 0.0
    %665 = vmatpush2.xpose.msra.mxu0 0.0
    %666 = vmatprep.subr.mxu0 0.0
    %667 = vmatpush2.xpose.msra.mxu0 0.0
    %668 = vmatprep.subr.mxu0 0.0
    %669 = vmatpush2.xpose.msra.mxu0 0.0
    %670 = vmatprep.subr.mxu0 0.0
    %671 = vmatpush2.xpose.msra.mxu0 0.0
    %672 = vmatprep.subr.mxu0 0.0
    %673 = vmatpush2.xpose.msra.mxu0 0.0
    %674 = vmatprep.subr.mxu0 0.0
    %675 = vmatpush2.xpose.msra.mxu0 0.0
    %676 = vmatprep.subr.mxu0 0.0
    %677 = vmatpush2.xpose.msra.mxu0 0.0
    %678 = vmatprep.subr.mxu0 0.0
    %679 = vmatpush2.xpose.msra.mxu0 0.0
    %680 = vmatprep.subr.mxu0 0.0
    %681 = vmatpush2.xpose.msra.mxu0 0.0
    %682 = vmatprep.subr.mxu0 0.0
    %683 = vmatpush2.xpose.msra.mxu0 0.0
    %684 = vmatprep.subr.mxu0 0.0
    %685 = vmatpush2.xpose.msra.mxu0 0.0
    %686 = vmatprep.subr.mxu0 0.0
    %687 = vmatpush2.xpose.msra.mxu0 0.0
    %688 = vmatprep.subr.mxu0 0.0
    %689 = vmatpush2.xpose.msra.mxu0 0.0
    %690 = vmatprep.subr.mxu0 0.0
    %691 = vmatpush2.xpose.msra.mxu0 0.0
    %692 = vmatprep.subr.mxu0 0.0
    %693 = vmatpush2.xpose.msra.mxu0 0.0
    %694 = vmatprep.subr.mxu0 0.0
    %695 = vmatpush2.xpose.msra.mxu0 0.0
    %696 = vmatprep.mubr.f32.mxu0 %v398
    %697 = vmatmul.mubr.f32.gmra.mxu0 %v397
    %v698 = vpop.f32.mrf.mxu0
    %v699 = vadd.f32 %v629, %v698
    %v700 = vpop.f32.mrf.mxu0
    %701 = vdwg.mxu0
    %vm702 = vcmask 74752
    %703 = vst.msk [vmem:[#allocation10] sm:$0x3] %vm702, %v699
    // Predicated region
    $region38: #{fecnn_forward.1} parent=1 // pred_check
      _
    $region39: #{fecnn_forward.1} parent=1 // pred_check_branch
      %705 = sbr.rel (0) target = $region41
    $region40: #{fecnn_forward.1} parent=1 // pred_region
      %s707 = ssub.s32 32, 32
      %708 = vsyncadd [#allocation4], %s707
      %s710 = sshll.u32 [#allocation10], 4
      %s711 = int_to_ptr.vmem [resolvable:$true] %s710
      %713 = dma.vmem_to_hbm [thread:$0]  %s711, 32, %s5, [#allocation4]
    $region41: #{fecnn_forward.1} parent=1 // pred_fallthru
      _
    // Predicated region
    $region42: #{fecnn_forward.1} parent=1 // pred_check
      _
    $region43: #{fecnn_forward.1} parent=1 // pred_check_branch
      %715 = sbr.rel (0) target = $region45
    $region44: #{fecnn_forward.1} parent=1 // pred_region
      %716 = dma.done [#allocation4], 32
    $region45: #{fecnn_forward.1} parent=1 // pred_fallthru
      _
    %717 = vsyncpa [#allocation3], 1
    %718 = vsyncpa [#allocation6], 1
    %719 = vsyncpa [#allocation9], 1
    %720 = vsyncpa [#allocation4], 1

</llo_original>
